<compile_context>
chip_gen: v6e
topology: v6e:2x2x1
jax: 0.10.0
libtpu: 0.0.40
codegen_flags: <defaults>
</compile_context>

<pallas_src>
import functools

import jax
import jax.numpy as jnp
from jax.experimental import pallas as pl
from jax.experimental.pallas import tpu as pltpu

D_IN = 384
D_HID = 256
N_CLASSES = 20
DEFAULT_TB = 2048      # batch-tile target (kernel is HBM/overhead bound below ~1-2K rows)


def _round_up(x, m):
    return ((x + m - 1) // m) * m


def _choose_batch_tiling(B, tb_target):
    """Pick (tile_rows, padded_batch).

    Small batches -> a single 16-row-aligned tile. Larger batches -> at least two tiles
    (v7x has 2 TensorCores and the 'parallel' batch axis is how they get sharded), with
    the tile rounded to 16 rows so tail padding (and wasted GEMM/DMA work) stays small.
    """
    b_eff = _round_up(max(B, 1), 16)
    if b_eff <= 512:
        return b_eff, b_eff
    n_tiles = max(2, -(-b_eff // tb_target))
    tb = _round_up(-(-b_eff // n_tiles), 16)
    return tb, n_tiles * tb


def head_kernel(x_ref, w1_ref, b1_ref, w2_ref, b2_ref, o_ref):
    # x arrives f32 (no separate wrapper-side cast pass); cast to bf16 on the VPU for the MXU.
    x_bf = x_ref[...].astype(jnp.bfloat16)
    # GEMM1: (TB, 384)bf16 @ (384, 256)bf16 -> f32 accumulation on the MXU.
    h = jnp.dot(x_bf, w1_ref[...], preferred_element_type=jnp.float32)
    # Bias + LeakyReLU(0.1) in f32 (VALU slots are free under the MXU; v5e has no bf16 VALU).
    h = h + b1_ref[...]
    h = jnp.where(h >= 0, h, 0.1 * h)
    # Dropout(0.5) -> identity in inference mode.
    # GEMM2: (TB, 256)bf16 @ (256, n_pad)bf16 -> f32 accum; padded N keeps stores lane-dense.
    out = jnp.dot(h.astype(jnp.bfloat16), w2_ref[...],
                  preferred_element_type=jnp.float32)
    out = out + b2_ref[...]
    o_ref[...] = out.astype(o_ref.dtype)


@functools.partial(jax.jit, static_argnames=("tb_target", "out_dtype"))
def classifier_head(x, w1, b1, w2, b2, *, tb_target=DEFAULT_TB, out_dtype=jnp.bfloat16):
    """x: (B, 384); w1: (384, 256); b1: (1, 256); w2: (256, n_cls); b2: (1, n_cls)."""
    B = x.shape[0]
    n_cls = w2.shape[1]
    n_pad = _round_up(n_cls, 128)          # lane-dense output width, safe for n_cls > 128

    tb, b_pad = _choose_batch_tiling(B, tb_target)

    x = x.astype(jnp.float32)              # kernel reads f32 x and casts in-register
    if b_pad != B:
        x = jnp.pad(x, ((0, b_pad - B), (0, 0)))

    if n_pad != n_cls:
        w2 = jnp.pad(w2, ((0, 0), (0, n_pad - n_cls)))
        b2 = jnp.pad(b2, ((0, 0), (0, n_pad - n_cls)))

    # Weights are tiny (~250 KiB); a one-time wrapper cast to bf16 is negligible.
    w1_bf = w1.astype(jnp.bfloat16)
    w2_bf = w2.astype(jnp.bfloat16)
    b1_f32 = b1.astype(jnp.float32).reshape(1, D_HID)
    b2_f32 = b2.astype(jnp.float32).reshape(1, n_pad)

    grid = (b_pad // tb,)
    out_itemsize = jnp.dtype(out_dtype).itemsize

    flops = 2 * b_pad * (D_IN * D_HID + D_HID * n_pad)
    bytes_accessed = (
        x.size * 4                                  # f32 x read
        + w1_bf.size * 2 + w2_bf.size * 2           # bf16 weights
        + b1_f32.size * 4 + b2_f32.size * 4         # f32 biases
        + b_pad * n_pad * out_itemsize              # output writeback
    )

    # Double-buffered VMEM footprint; only raise the scoped limit when actually needed
    # (v5e default scoped VMEM is 16 MiB, v6e/v7x 32 MiB).
    vmem_needed = (
        2 * tb * D_IN * 4                           # x tiles (f32)
        + 2 * tb * n_pad * out_itemsize             # out tiles
        + 2 * (w1_bf.size * 2 + w2_bf.size * 2 + b1_f32.size * 4 + b2_f32.size * 4)
    )
    vmem_limit = None
    if vmem_needed > (12 << 20):
        vmem_limit = min(vmem_needed + (4 << 20), 64 << 20)

    out_padded = pl.pallas_call(
        head_kernel,
        out_shape=jax.ShapeDtypeStruct((b_pad, n_pad), out_dtype),
        grid_spec=pltpu.PrefetchScalarGridSpec(
            num_scalar_prefetch=0,
            grid=grid,
            in_specs=[
                pl.BlockSpec((tb, D_IN), lambda i: (i, 0)),       # x tile (pipelined, f32)
                pl.BlockSpec((D_IN, D_HID), lambda i: (0, 0)),    # w1 (VMEM resident)
                pl.BlockSpec((1, D_HID), lambda i: (0, 0)),       # b1
                pl.BlockSpec((D_HID, n_pad), lambda i: (0, 0)),   # w2 (padded, VMEM resident)
                pl.BlockSpec((1, n_pad), lambda i: (0, 0)),       # b2 (padded)
            ],
            out_specs=pl.BlockSpec((tb, n_pad), lambda i: (i, 0)),
        ),
        compiler_params=pltpu.CompilerParams(
            dimension_semantics=("parallel",),
            vmem_limit_bytes=vmem_limit,
        ),
        cost_estimate=pl.CostEstimate(
            flops=flops, transcendentals=0, bytes_accessed=bytes_accessed
        ),
    )(x, w1_bf, b1_f32, w2_bf, b2_f32)

    return out_padded[:B, :n_cls]


def init_params(key, n_classes=N_CLASSES):
    """Deterministic init mimicking nn.Linear defaults (uniform +/- 1/sqrt(fan_in))."""
    k1, k2, k3, k4 = jax.random.split(key, 4)
    bound1 = 1.0 / jnp.sqrt(jnp.float32(D_IN))
    bound2 = 1.0 / jnp.sqrt(jnp.float32(D_HID))
    w1 = jax.random.uniform(k1, (D_IN, D_HID), jnp.float32, -bound1, bound1)
    b1 = jax.random.uniform(k2, (1, D_HID), jnp.float32, -bound1, bound1)
    w2 = jax.random.uniform(k3, (D_HID, n_classes), jnp.float32, -bound2, bound2)
    b2 = jax.random.uniform(k4, (1, n_classes), jnp.float32, -bound2, bound2)
    return w1, b1, w2, b2


def reference_head(x, w1, b1, w2, b2):
    h = x @ w1 + b1
    h = jnp.where(h >= 0, h, 0.1 * h)
    return h @ w2 + b2


if __name__ == "__main__":
    key = jax.random.PRNGKey(0)
    kx, kp = jax.random.split(key)

    B = 8  # small batch of pre-embedded sentences (384-d each)
    x = jax.random.normal(kx, (B, D_IN), jnp.float32)
    w1, b1, w2, b2 = init_params(kp)

    out = classifier_head(x, w1, b1, w2, b2)
    out = jax.block_until_ready(out)

    ref = reference_head(x, w1, b1, w2, b2)
    assert out.shape == (B, N_CLASSES), out.shape
    # bf16 matmul operands + bf16 logits with f32 accumulation: ~1e-2 relative error vs f32 ref.
    assert jnp.allclose(out.astype(jnp.float32), ref, atol=5e-2, rtol=5e-2), (
        float(jnp.max(jnp.abs(out.astype(jnp.float32) - ref)))
    )

    print("KERNEL_OK")
</pallas_src>

<mosaic_0001>
module attributes {stable_mosaic.version = 11 : i64} {
  func.func @head_kernel(%arg0: i32, %arg1: memref<16x384xf32, #tpu.memory_space<vmem>>, %arg2: memref<384x256xbf16, #tpu.memory_space<vmem>>, %arg3: memref<1x256xf32, #tpu.memory_space<vmem>>, %arg4: memref<256x128xbf16, #tpu.memory_space<vmem>>, %arg5: memref<1x128xf32, #tpu.memory_space<vmem>>, %arg6: memref<16x128xbf16, #tpu.memory_space<vmem>>) attributes {dimension_semantics = [#tpu.dimension_semantics<parallel>], iteration_bounds = array<i64: 1>, scalar_prefetch = 0 : i64, scratch_operands = 0 : i64, tpu.core_type = #tpu.core_type<tc>, window_params = [{transform_indices = @transform_0, window_bounds = array<i64: 16, 384>}, {pipeline_mode = #tpu.pipeline_mode<synchronous>, transform_indices = @transform_1, window_bounds = array<i64: 384, 256>}, {pipeline_mode = #tpu.pipeline_mode<synchronous>, transform_indices = @transform_2, window_bounds = array<i64: 1, 256>}, {pipeline_mode = #tpu.pipeline_mode<synchronous>, transform_indices = @transform_3, window_bounds = array<i64: 256, 128>}, {pipeline_mode = #tpu.pipeline_mode<synchronous>, transform_indices = @transform_4, window_bounds = array<i64: 1, 128>}, {transform_indices = @transform_5, window_bounds = array<i64: 16, 128>}]} {
    %c0 = arith.constant 0 : index
    %c0_0 = arith.constant 0 : index
    %0 = vector.load %arg1[%c0, %c0_0] : memref<16x384xf32, #tpu.memory_space<vmem>>, vector<16x384xf32>
    %1 = arith.truncf %0 : vector<16x384xf32> to vector<16x384xbf16>
    %c0_1 = arith.constant 0 : index
    %c0_2 = arith.constant 0 : index
    %2 = vector.load %arg2[%c0_1, %c0_2] : memref<384x256xbf16, #tpu.memory_space<vmem>>, vector<384x256xbf16>
    %cst = arith.constant dense<0.000000e+00> : vector<16x256xf32>
    %3 = tpu.matmul %1, %2, %cst {dimension_numbers = #tpu.dot_dimension_numbers<[1], [0], [0], [1], [0, 0, 1, 1], [], []>} : vector<16x384xbf16>, vector<384x256xbf16>, vector<16x256xf32> -> vector<16x256xf32>
    %c0_3 = arith.constant 0 : index
    %c0_4 = arith.constant 0 : index
    %4 = vector.load %arg3[%c0_3, %c0_4] : memref<1x256xf32, #tpu.memory_space<vmem>>, vector<1x256xf32>
    %5 = vector.broadcast %4 : vector<1x256xf32> to vector<16x256xf32>
    %6 = arith.addf %3, %5 : vector<16x256xf32>
    %cst_5 = arith.constant 0.000000e+00 : f32
    %7 = vector.broadcast %cst_5 : f32 to vector<16x256xf32>
    %8 = arith.cmpf oge, %6, %7 : vector<16x256xf32>
    %cst_6 = arith.constant 1.000000e-01 : f32
    %9 = vector.broadcast %cst_6 : f32 to vector<16x256xf32>
    %10 = arith.mulf %9, %6 : vector<16x256xf32>
    %11 = arith.select %8, %6, %10 : vector<16x256xi1>, vector<16x256xf32>
    %12 = arith.truncf %11 : vector<16x256xf32> to vector<16x256xbf16>
    %c0_7 = arith.constant 0 : index
    %c0_8 = arith.constant 0 : index
    %13 = vector.load %arg4[%c0_7, %c0_8] : memref<256x128xbf16, #tpu.memory_space<vmem>>, vector<256x128xbf16>
    %cst_9 = arith.constant dense<0.000000e+00> : vector<16x128xf32>
    %14 = tpu.matmul %12, %13, %cst_9 {dimension_numbers = #tpu.dot_dimension_numbers<[1], [0], [0], [1], [0, 0, 1, 1], [], []>} : vector<16x256xbf16>, vector<256x128xbf16>, vector<16x128xf32> -> vector<16x128xf32>
    %c0_10 = arith.constant 0 : index
    %c0_11 = arith.constant 0 : index
    %15 = vector.load %arg5[%c0_10, %c0_11] : memref<1x128xf32, #tpu.memory_space<vmem>>, vector<1x128xf32>
    %16 = vector.broadcast %15 : vector<1x128xf32> to vector<16x128xf32>
    %17 = arith.addf %14, %16 : vector<16x128xf32>
    %18 = arith.truncf %17 : vector<16x128xf32> to vector<16x128xbf16>
    %c0_12 = arith.constant 0 : index
    %c0_13 = arith.constant 0 : index
    %19 = vector.load %arg6[%c0_12, %c0_13] : memref<16x128xbf16, #tpu.memory_space<vmem>>, vector<16x128xbf16>
    tpu.vector_store %arg6[%c0_12, %c0_13], %18 {strides = array<i32>} : memref<16x128xbf16, #tpu.memory_space<vmem>>, vector<16x128xbf16>,
    return
  }
  func.func @transform_0(%arg0: i32) -> (i32, i32) {
    %c0_i32 = arith.constant 0 : i32
    %c0_i32_0 = arith.constant 0 : i32
    return %arg0, %c0_i32 : i32, i32
  }
  func.func @transform_1(%arg0: i32) -> (i32, i32) {
    %c0_i32 = arith.constant 0 : i32
    %c0_i32_0 = arith.constant 0 : i32
    %c0_i32_1 = arith.constant 0 : i32
    return %c0_i32, %c0_i32_0 : i32, i32
  }
  func.func @transform_2(%arg0: i32) -> (i32, i32) {
    %c0_i32 = arith.constant 0 : i32
    %c0_i32_0 = arith.constant 0 : i32
    %c0_i32_1 = arith.constant 0 : i32
    return %c0_i32, %c0_i32_0 : i32, i32
  }
  func.func @transform_3(%arg0: i32) -> (i32, i32) {
    %c0_i32 = arith.constant 0 : i32
    %c0_i32_0 = arith.constant 0 : i32
    %c0_i32_1 = arith.constant 0 : i32
    return %c0_i32, %c0_i32_0 : i32, i32
  }
  func.func @transform_4(%arg0: i32) -> (i32, i32) {
    %c0_i32 = arith.constant 0 : i32
    %c0_i32_0 = arith.constant 0 : i32
    %c0_i32_1 = arith.constant 0 : i32
    return %c0_i32, %c0_i32_0 : i32, i32
  }
  func.func @transform_5(%arg0: i32) -> (i32, i32) {
    %c0_i32 = arith.constant 0 : i32
    %c0_i32_0 = arith.constant 0 : i32
    return %arg0, %c0_i32 : i32, i32
  }
}

</mosaic_0001>

<llo_original>
// kernel: classifier_head.1
$region0: #{classifier_head.1}
  #allocation0 [shape = 'u32[]', space=smem, size = 0x4, offset = 0x4, fixed_abs, tag = 'smem constant byte address 0x4 - core index']
  #allocation1 [shape = 'u32[144,128]{1,0:T(1,128)}', space=vmem, size = 0x12000, scoped, tag = 'internal scratch']
  %s0 = inlined_call_operand.vmem [shape: f32[16,384], index: 0, kind: input, shape index: {}]
  %s1 = inlined_call_operand.vmem [shape: bf16[384,256], index: 1, kind: input, shape index: {}]
  %s2 = inlined_call_operand.vmem [shape: f32[1,256], index: 2, kind: input, shape index: {}]
  %s3 = inlined_call_operand.vmem [shape: bf16[256,128], index: 3, kind: input, shape index: {}]
  %s4 = inlined_call_operand.vmem [shape: f32[1,128], index: 4, kind: input, shape index: {}]
  %s5 = inlined_call_operand.vmem [shape: bf16[16,128], index: 5, kind: output, shape index: {}]
  %s6 = sld [smem:[#allocation0]]
  $region30: #{classifier_head.1} parent=0
    _
  %s8 = ssub.s32 1, %s6
  %s9 = scalar_select 0, %s8, %s6
  // Predicated region
  $region2: #{classifier_head.1} parent=0 // pred_check
    _
  $region3: #{classifier_head.1} parent=0 // pred_check_branch
    %11 = sbr.rel (0) target = $region5
  $region4: #{classifier_head.1} parent=0 // pred_region
    _
  $region5: #{classifier_head.1} parent=0 // pred_fallthru
    _
  // Predicated region
  $region6: #{classifier_head.1} parent=0 // pred_check
    _
  $region7: #{classifier_head.1} parent=0 // pred_check_branch
    %13 = sbr.rel (0) target = $region9
  $region8: #{classifier_head.1} parent=0 // pred_region
    _
  $region9: #{classifier_head.1} parent=0 // pred_fallthru
    _
  // Predicated region
  $region10: #{classifier_head.1} parent=0 // pred_check
    _
  $region11: #{classifier_head.1} parent=0 // pred_check_branch
    %15 = sbr.rel (0) target = $region13
  $region12: #{classifier_head.1} parent=0 // pred_region
    _
  $region13: #{classifier_head.1} parent=0 // pred_fallthru
    _
  // Predicated region
  $region14: #{classifier_head.1} parent=0 // pred_check
    _
  $region15: #{classifier_head.1} parent=0 // pred_check_branch
    %17 = sbr.rel (0) target = $region17
  $region16: #{classifier_head.1} parent=0 // pred_region
    _
  $region17: #{classifier_head.1} parent=0 // pred_fallthru
    _
  // Predicated region
  $region18: #{classifier_head.1} parent=0 // pred_check
    _
  $region19: #{classifier_head.1} parent=0 // pred_check_branch
    %19 = sbr.rel (0) target = $region21
  $region20: #{classifier_head.1} parent=0 // pred_region
    _
  $region21: #{classifier_head.1} parent=0 // pred_fallthru
    _
  %v21 = vld [vmem:[%s0] sm:$0xff]
  %v22 = vld [vmem:[%s0 + $0x8] sm:$0xff]
  %v23 = vld [vmem:[%s0 + $0x10] sm:$0xff]
  %v24 = vld [vmem:[%s0 + $0x18] sm:$0xff]
  %v25 = vld [vmem:[%s0 + $0x20] sm:$0xff]
  %v26 = vld [vmem:[%s0 + $0x28] sm:$0xff]
  %v27 = vpack.c.bf16 %v24, %v21
  %v28 = vpack.c.bf16 %v25, %v22
  %v29 = vpack.c.bf16 %v26, %v23
  %v30 = vld [vmem:[%s1] sm:$0xff]
  %v31 = vld [vmem:[%s1 + $0x8] sm:$0xff]
  %v32 = vld [vmem:[%s1 + $0x10] sm:$0xff]
  %v33 = vld [vmem:[%s1 + $0x18] sm:$0xff]
  %v34 = vld [vmem:[%s1 + $0x20] sm:$0xff]
  %v35 = vld [vmem:[%s1 + $0x28] sm:$0xff]
  %v36 = vld [vmem:[%s1 + $0x30] sm:$0xff]
  %v37 = vld [vmem:[%s1 + $0x38] sm:$0xff]
  %v38 = vld [vmem:[%s1 + $0x40] sm:$0xff]
  %v39 = vld [vmem:[%s1 + $0x48] sm:$0xff]
  %v40 = vld [vmem:[%s1 + $0x50] sm:$0xff]
  %v41 = vld [vmem:[%s1 + $0x58] sm:$0xff]
  %v42 = vld [vmem:[%s1 + $0x60] sm:$0xff]
  %v43 = vld [vmem:[%s1 + $0x68] sm:$0xff]
  %v44 = vld [vmem:[%s1 + $0x70] sm:$0xff]
  %v45 = vld [vmem:[%s1 + $0x78] sm:$0xff]
  %v46 = vld [vmem:[%s1 + $0x80] sm:$0xff]
  %v47 = vld [vmem:[%s1 + $0x88] sm:$0xff]
  %v48 = vld [vmem:[%s1 + $0x90] sm:$0xff]
  %v49 = vld [vmem:[%s1 + $0x98] sm:$0xff]
  %v50 = vld [vmem:[%s1 + $0xa0] sm:$0xff]
  %v51 = vld [vmem:[%s1 + $0xa8] sm:$0xff]
  %v52 = vld [vmem:[%s1 + $0xb0] sm:$0xff]
  %v53 = vld [vmem:[%s1 + $0xb8] sm:$0xff]
  %v54 = vld [vmem:[%s1 + $0xc0] sm:$0xff]
  %v55 = vld [vmem:[%s1 + $0xc8] sm:$0xff]
  %v56 = vld [vmem:[%s1 + $0xd0] sm:$0xff]
  %v57 = vld [vmem:[%s1 + $0xd8] sm:$0xff]
  %v58 = vld [vmem:[%s1 + $0xe0] sm:$0xff]
  %v59 = vld [vmem:[%s1 + $0xe8] sm:$0xff]
  %v60 = vld [vmem:[%s1 + $0xf0] sm:$0xff]
  %v61 = vld [vmem:[%s1 + $0xf8] sm:$0xff]
  %v62 = vld [vmem:[%s1 + $0x100] sm:$0xff]
  %v63 = vld [vmem:[%s1 + $0x108] sm:$0xff]
  %v64 = vld [vmem:[%s1 + $0x110] sm:$0xff]
  %v65 = vld [vmem:[%s1 + $0x118] sm:$0xff]
  %v66 = vld [vmem:[%s1 + $0x120] sm:$0xff]
  %v67 = vld [vmem:[%s1 + $0x128] sm:$0xff]
  %v68 = vld [vmem:[%s1 + $0x130] sm:$0xff]
  %v69 = vld [vmem:[%s1 + $0x138] sm:$0xff]
  %v70 = vld [vmem:[%s1 + $0x140] sm:$0xff]
  %v71 = vld [vmem:[%s1 + $0x148] sm:$0xff]
  %v72 = vld [vmem:[%s1 + $0x150] sm:$0xff]
  %v73 = vld [vmem:[%s1 + $0x158] sm:$0xff]
  %v74 = vld [vmem:[%s1 + $0x160] sm:$0xff]
  %v75 = vld [vmem:[%s1 + $0x168] sm:$0xff]
  %v76 = vld [vmem:[%s1 + $0x170] sm:$0xff]
  %v77 = vld [vmem:[%s1 + $0x178] sm:$0xff]
  %v78 = vld [vmem:[%s2] sm:$0x3]
  %v80 = vlaneseq
  %v81 = vshrl.u32 %v80, 7
  %v82 = vsub.s32 0, %v81
  %v83 = vrot.slane %v78, %v82
  %v84 = vlaneseq
  %v85 = vshrl.u32 %v84, 7
  %v86 = vsub.s32 1, %v85
  %v87 = vrot.slane %v78, %v86
  %v138 = vunpack.c.l.b16 %v30
  %v139 = vunpack.c.h.b16 %v30
  %v140 = vunpack.c.l.b16 %v31
  %v141 = vunpack.c.h.b16 %v31
  %v142 = vunpack.c.l.b16 %v32
  %v143 = vunpack.c.h.b16 %v32
  %v144 = vunpack.c.l.b16 %v33
  %v145 = vunpack.c.h.b16 %v33
  %v146 = vunpack.c.l.b16 %v34
  %v147 = vunpack.c.h.b16 %v34
  %v148 = vunpack.c.l.b16 %v35
  %v149 = vunpack.c.h.b16 %v35
  %v150 = vunpack.c.l.b16 %v36
  %v151 = vunpack.c.h.b16 %v36
  %v152 = vunpack.c.l.b16 %v37
  %v153 = vunpack.c.h.b16 %v37
  %v154 = vunpack.c.l.b16 %v38
  %v155 = vunpack.c.h.b16 %v38
  %v156 = vunpack.c.l.b16 %v39
  %v157 = vunpack.c.h.b16 %v39
  %v158 = vunpack.c.l.b16 %v40
  %v159 = vunpack.c.h.b16 %v40
  %v160 = vunpack.c.l.b16 %v41
  %v161 = vunpack.c.h.b16 %v41
  %v162 = vunpack.c.l.b16 %v42
  %v163 = vunpack.c.h.b16 %v42
  %v164 = vunpack.c.l.b16 %v43
  %v165 = vunpack.c.h.b16 %v43
  %v166 = vunpack.c.l.b16 %v44
  %v167 = vunpack.c.h.b16 %v44
  %v168 = vunpack.c.l.b16 %v45
  %v169 = vunpack.c.h.b16 %v45
  %v170 = vunpack.c.l.b16 %v46
  %v171 = vunpack.c.h.b16 %v46
  %v172 = vunpack.c.l.b16 %v47
  %v173 = vunpack.c.h.b16 %v47
  %v174 = vunpack.c.l.b16 %v48
  %v175 = vunpack.c.h.b16 %v48
  %v176 = vunpack.c.l.b16 %v49
  %v177 = vunpack.c.h.b16 %v49
  %v178 = vunpack.c.l.b16 %v50
  %v179 = vunpack.c.h.b16 %v50
  %v180 = vunpack.c.l.b16 %v51
  %v181 = vunpack.c.h.b16 %v51
  %v182 = vunpack.c.l.b16 %v52
  %v183 = vunpack.c.h.b16 %v52
  %v184 = vunpack.c.l.b16 %v53
  %v185 = vunpack.c.h.b16 %v53
  %v186 = vunpack.c.l.b16 %v54
  %v187 = vunpack.c.h.b16 %v54
  %v188 = vunpack.c.l.b16 %v55
  %v189 = vunpack.c.h.b16 %v55
  %v190 = vunpack.c.l.b16 %v56
  %v191 = vunpack.c.h.b16 %v56
  %v192 = vunpack.c.l.b16 %v57
  %v193 = vunpack.c.h.b16 %v57
  %v194 = vunpack.c.l.b16 %v58
  %v195 = vunpack.c.h.b16 %v58
  %v196 = vunpack.c.l.b16 %v59
  %v197 = vunpack.c.h.b16 %v59
  %v198 = vunpack.c.l.b16 %v60
  %v199 = vunpack.c.h.b16 %v60
  %v200 = vunpack.c.l.b16 %v61
  %v201 = vunpack.c.h.b16 %v61
  %v202 = vunpack.c.l.b16 %v62
  %v203 = vunpack.c.h.b16 %v62
  %v204 = vunpack.c.l.b16 %v63
  %v205 = vunpack.c.h.b16 %v63
  %v206 = vunpack.c.l.b16 %v64
  %v207 = vunpack.c.h.b16 %v64
  %v208 = vunpack.c.l.b16 %v65
  %v209 = vunpack.c.h.b16 %v65
  %v210 = vunpack.c.l.b16 %v66
  %v211 = vunpack.c.h.b16 %v66
  %v212 = vunpack.c.l.b16 %v67
  %v213 = vunpack.c.h.b16 %v67
  %v214 = vunpack.c.l.b16 %v68
  %v215 = vunpack.c.h.b16 %v68
  %v216 = vunpack.c.l.b16 %v69
  %v217 = vunpack.c.h.b16 %v69
  %v218 = vunpack.c.l.b16 %v70
  %v219 = vunpack.c.h.b16 %v70
  %v220 = vunpack.c.l.b16 %v71
  %v221 = vunpack.c.h.b16 %v71
  %v222 = vunpack.c.l.b16 %v72
  %v223 = vunpack.c.h.b16 %v72
  %v224 = vunpack.c.l.b16 %v73
  %v225 = vunpack.c.h.b16 %v73
  %v226 = vunpack.c.l.b16 %v74
  %v227 = vunpack.c.h.b16 %v74
  %v228 = vunpack.c.l.b16 %v75
  %v229 = vunpack.c.h.b16 %v75
  %v230 = vunpack.c.l.b16 %v76
  %v231 = vunpack.c.h.b16 %v76
  %v232 = vunpack.c.l.b16 %v77
  %v233 = vunpack.c.h.b16 %v77
  %v234 = vpack.c.b16 %v140, %v138
  %v235 = vpack.c.b16 %v141, %v139
  %v236 = vpack.c.b16 %v144, %v142
  %v237 = vpack.c.b16 %v145, %v143
  %v238 = vpack.c.b16 %v148, %v146
  %v239 = vpack.c.b16 %v149, %v147
  %v240 = vpack.c.b16 %v152, %v150
  %v241 = vpack.c.b16 %v153, %v151
  %v242 = vpack.c.b16 %v156, %v154
  %v243 = vpack.c.b16 %v157, %v155
  %v244 = vpack.c.b16 %v160, %v158
  %v245 = vpack.c.b16 %v161, %v159
  %v246 = vpack.c.b16 %v164, %v162
  %v247 = vpack.c.b16 %v165, %v163
  %v248 = vpack.c.b16 %v168, %v166
  %v249 = vpack.c.b16 %v169, %v167
  %v250 = vpack.c.b16 %v172, %v170
  %v251 = vpack.c.b16 %v173, %v171
  %v252 = vpack.c.b16 %v176, %v174
  %v253 = vpack.c.b16 %v177, %v175
  %v254 = vpack.c.b16 %v180, %v178
  %v255 = vpack.c.b16 %v181, %v179
  %v256 = vpack.c.b16 %v184, %v182
  %v257 = vpack.c.b16 %v185, %v183
  %v258 = vpack.c.b16 %v188, %v186
  %v259 = vpack.c.b16 %v189, %v187
  %v260 = vpack.c.b16 %v192, %v190
  %v261 = vpack.c.b16 %v193, %v191
  %v262 = vpack.c.b16 %v196, %v194
  %v263 = vpack.c.b16 %v197, %v195
  %v264 = vpack.c.b16 %v200, %v198
  %v265 = vpack.c.b16 %v201, %v199
  %v266 = vpack.c.b16 %v204, %v202
  %v267 = vpack.c.b16 %v205, %v203
  %v268 = vpack.c.b16 %v208, %v206
  %v269 = vpack.c.b16 %v209, %v207
  %v270 = vpack.c.b16 %v212, %v210
  %v271 = vpack.c.b16 %v213, %v211
  %v272 = vpack.c.b16 %v216, %v214
  %v273 = vpack.c.b16 %v217, %v215
  %v274 = vpack.c.b16 %v220, %v218
  %v275 = vpack.c.b16 %v221, %v219
  %v276 = vpack.c.b16 %v224, %v222
  %v277 = vpack.c.b16 %v225, %v223
  %v278 = vpack.c.b16 %v228, %v226
  %v279 = vpack.c.b16 %v229, %v227
  %v280 = vpack.c.b16 %v232, %v230
  %v281 = vpack.c.b16 %v233, %v231
  %330 = vmatprep.subr.bf16.mxu0 %v249
  %331 = vmatpush1.bf16.msra.mxu0 %v248
  %332 = vmatprep.subr.bf16.mxu0 %v247
  %333 = vmatpush1.bf16.msra.mxu0 %v246
  %334 = vmatprep.subr.bf16.mxu0 %v245
  %335 = vmatpush1.bf16.msra.mxu0 %v244
  %336 = vmatprep.subr.bf16.mxu0 %v243
  %337 = vmatpush1.bf16.msra.mxu0 %v242
  %338 = vmatprep.subr.bf16.mxu0 %v241
  %339 = vmatpush1.bf16.msra.mxu0 %v240
  %340 = vmatprep.subr.bf16.mxu0 %v239
  %341 = vmatpush1.bf16.msra.mxu0 %v238
  %342 = vmatprep.subr.bf16.mxu0 %v237
  %343 = vmatpush1.bf16.msra.mxu0 %v236
  %344 = vmatprep.subr.bf16.mxu0 %v235
  %345 = vmatpush1.bf16.msra.mxu0 %v234
  %346 = vmatprep.subr.bf16.mxu0 %v265
  %347 = vmatpush2.bf16.msra.mxu0 %v264
  %348 = vmatprep.subr.bf16.mxu0 %v263
  %349 = vmatpush2.bf16.msra.mxu0 %v262
  %350 = vmatprep.subr.bf16.mxu0 %v261
  %351 = vmatpush2.bf16.msra.mxu0 %v260
  %352 = vmatprep.subr.bf16.mxu0 %v259
  %353 = vmatpush2.bf16.msra.mxu0 %v258
  %354 = vmatprep.subr.bf16.mxu0 %v257
  %355 = vmatpush2.bf16.msra.mxu0 %v256
  %356 = vmatprep.subr.bf16.mxu0 %v255
  %357 = vmatpush2.bf16.msra.mxu0 %v254
  %358 = vmatprep.subr.bf16.mxu0 %v253
  %359 = vmatpush2.bf16.msra.mxu0 %v252
  %360 = vmatprep.subr.bf16.mxu0 %v251
  %361 = vmatpush2.bf16.msra.mxu0 %v250
  %362 = vmatprep.mubr.bf16.mxu0 %v28
  %363 = vmatmul.mubr.bf16.gmra.mxu0 %v27
  %v364 = vpop.f32.mrf.mxu0
  %v365 = vadd.f32 %v83, %v364
  %v366 = vpop.f32.mrf.mxu0
  %v367 = vadd.f32 %v87, %v366
  %v368 = vpop.f32.mrf.mxu0
  %v369 = vadd.f32 %v83, %v368
  %v370 = vpop.f32.mrf.mxu0
  %v371 = vadd.f32 %v87, %v370
  %372 = vdwg.mxu0
  %373 = vmatprep.subr.bf16.mxu0 %v281
  %374 = vmatpush1.bf16.msra.mxu0 %v280
  %375 = vmatprep.subr.bf16.mxu0 %v279
  %376 = vmatpush1.bf16.msra.mxu0 %v278
  %377 = vmatprep.subr.bf16.mxu0 %v277
  %378 = vmatpush1.bf16.msra.mxu0 %v276
  %379 = vmatprep.subr.bf16.mxu0 %v275
  %380 = vmatpush1.bf16.msra.mxu0 %v274
  %381 = vmatprep.subr.bf16.mxu0 %v273
  %382 = vmatpush1.bf16.msra.mxu0 %v272
  %383 = vmatprep.subr.bf16.mxu0 %v271
  %384 = vmatpush1.bf16.msra.mxu0 %v270
  %385 = vmatprep.subr.bf16.mxu0 %v269
  %386 = vmatpush1.bf16.msra.mxu0 %v268
  %387 = vmatprep.subr.bf16.mxu0 %v267
  %388 = vmatpush1.bf16.msra.mxu0 %v266
  %389 = vmatprep.subr.bf16.mxu0 0
  %390 = vmatpush2.bf16.msra.mxu0 0
  %391 = vmatprep.subr.bf16.mxu0 0
  %392 = vmatpush2.bf16.msra.mxu0 0
  %393 = vmatprep.subr.bf16.mxu0 0
  %394 = vmatpush2.bf16.msra.mxu0 0
  %395 = vmatprep.subr.bf16.mxu0 0
  %396 = vmatpush2.bf16.msra.mxu0 0
  %397 = vmatprep.subr.bf16.mxu0 0
  %398 = vmatpush2.bf16.msra.mxu0 0
  %399 = vmatprep.subr.bf16.mxu0 0
  %400 = vmatpush2.bf16.msra.mxu0 0
  %401 = vmatprep.subr.bf16.mxu0 0
  %402 = vmatpush2.bf16.msra.mxu0 0
  %403 = vmatprep.subr.bf16.mxu0 0
  %404 = vmatpush2.bf16.msra.mxu0 0
  %405 = vmatprep.mubr.bf16.mxu0 0
  %406 = vmatmul.mubr.bf16.gmra.mxu0 %v29
  %v407 = vpop.f32.mrf.mxu0
  %v408 = vadd.f32 %v365, %v407
  %v409 = vpop.f32.mrf.mxu0
  %v410 = vadd.f32 %v367, %v409
  %v411 = vpop.f32.mrf.mxu0
  %v412 = vadd.f32 %v369, %v411
  %v413 = vpop.f32.mrf.mxu0
  %v414 = vadd.f32 %v371, %v413
  %415 = vdwg.mxu0
  %vm416 = vcmp.ge.f32.partialorder %v408, 0.0
  %vm417 = vcmp.ge.f32.partialorder %v410, 0.0
  %vm418 = vcmp.ge.f32.partialorder %v412, 0.0
  %vm419 = vcmp.ge.f32.partialorder %v414, 0.0
  %v420 = vmul.f32 %v408, 0.1
  %v421 = vmul.f32 %v410, 0.1
  %v422 = vmul.f32 %v412, 0.1
  %v423 = vmul.f32 %v414, 0.1
  %v424 = vsel %vm416, %v408, %v420
  %v425 = vsel %vm417, %v410, %v421
  %v426 = vsel %vm418, %v412, %v422
  %v427 = vsel %vm419, %v414, %v423
  %v428 = vpack.c.bf16 %v426, %v424
  %v429 = vpack.c.bf16 %v427, %v425
  %v430 = vld [vmem:[%s3] sm:$0xf]
  %v431 = vld [vmem:[%s3 + $0x4] sm:$0xf]
  %v432 = vld [vmem:[%s3 + $0x8] sm:$0xf]
  %v433 = vld [vmem:[%s3 + $0xc] sm:$0xf]
  %v434 = vld [vmem:[%s3 + $0x10] sm:$0xf]
  %v435 = vld [vmem:[%s3 + $0x14] sm:$0xf]
  %v436 = vld [vmem:[%s3 + $0x18] sm:$0xf]
  %v437 = vld [vmem:[%s3 + $0x1c] sm:$0xf]
  %v438 = vld [vmem:[%s3 + $0x20] sm:$0xf]
  %v439 = vld [vmem:[%s3 + $0x24] sm:$0xf]
  %v440 = vld [vmem:[%s3 + $0x28] sm:$0xf]
  %v441 = vld [vmem:[%s3 + $0x2c] sm:$0xf]
  %v442 = vld [vmem:[%s3 + $0x30] sm:$0xf]
  %v443 = vld [vmem:[%s3 + $0x34] sm:$0xf]
  %v444 = vld [vmem:[%s3 + $0x38] sm:$0xf]
  %v445 = vld [vmem:[%s3 + $0x3c] sm:$0xf]
  %v446 = vld [vmem:[%s3 + $0x40] sm:$0xf]
  %v447 = vld [vmem:[%s3 + $0x44] sm:$0xf]
  %v448 = vld [vmem:[%s3 + $0x48] sm:$0xf]
  %v449 = vld [vmem:[%s3 + $0x4c] sm:$0xf]
  %v450 = vld [vmem:[%s3 + $0x50] sm:$0xf]
  %v451 = vld [vmem:[%s3 + $0x54] sm:$0xf]
  %v452 = vld [vmem:[%s3 + $0x58] sm:$0xf]
  %v453 = vld [vmem:[%s3 + $0x5c] sm:$0xf]
  %v454 = vld [vmem:[%s3 + $0x60] sm:$0xf]
  %v455 = vld [vmem:[%s3 + $0x64] sm:$0xf]
  %v456 = vld [vmem:[%s3 + $0x68] sm:$0xf]
  %v457 = vld [vmem:[%s3 + $0x6c] sm:$0xf]
  %v458 = vld [vmem:[%s3 + $0x70] sm:$0xf]
  %v459 = vld [vmem:[%s3 + $0x74] sm:$0xf]
  %v460 = vld [vmem:[%s3 + $0x78] sm:$0xf]
  %v461 = vld [vmem:[%s3 + $0x7c] sm:$0xf]
  %v462 = vld [vmem:[%s4] sm:$0x1]
  %v464 = vlaneseq
  %v465 = vshrl.u32 %v464, 7
  %v466 = vsub.s32 0, %v465
  %v467 = vrot.slane %v462, %v466
  %v501 = vunpack.c.l.b16 %v430
  %v502 = vunpack.c.l.b16 %v431
  %v503 = vunpack.c.l.b16 %v432
  %v504 = vunpack.c.l.b16 %v433
  %v505 = vunpack.c.l.b16 %v434
  %v506 = vunpack.c.l.b16 %v435
  %v507 = vunpack.c.l.b16 %v436
  %v508 = vunpack.c.l.b16 %v437
  %v509 = vunpack.c.l.b16 %v438
  %v510 = vunpack.c.l.b16 %v439
  %v511 = vunpack.c.l.b16 %v440
  %v512 = vunpack.c.l.b16 %v441
  %v513 = vunpack.c.l.b16 %v442
  %v514 = vunpack.c.l.b16 %v443
  %v515 = vunpack.c.l.b16 %v444
  %v516 = vunpack.c.l.b16 %v445
  %v517 = vunpack.c.l.b16 %v446
  %v518 = vunpack.c.l.b16 %v447
  %v519 = vunpack.c.l.b16 %v448
  %v520 = vunpack.c.l.b16 %v449
  %v521 = vunpack.c.l.b16 %v450
  %v522 = vunpack.c.l.b16 %v451
  %v523 = vunpack.c.l.b16 %v452
  %v524 = vunpack.c.l.b16 %v453
  %v525 = vunpack.c.l.b16 %v454
  %v526 = vunpack.c.l.b16 %v455
  %v527 = vunpack.c.l.b16 %v456
  %v528 = vunpack.c.l.b16 %v457
  %v529 = vunpack.c.l.b16 %v458
  %v530 = vunpack.c.l.b16 %v459
  %v531 = vunpack.c.l.b16 %v460
  %v532 = vunpack.c.l.b16 %v461
  %v533 = vpack.c.b16 %v502, %v501
  %v534 = vpack.c.b16 %v504, %v503
  %v535 = vpack.c.b16 %v506, %v505
  %v536 = vpack.c.b16 %v508, %v507
  %v537 = vpack.c.b16 %v510, %v509
  %v538 = vpack.c.b16 %v512, %v511
  %v539 = vpack.c.b16 %v514, %v513
  %v540 = vpack.c.b16 %v516, %v515
  %v541 = vpack.c.b16 %v518, %v517
  %v542 = vpack.c.b16 %v520, %v519
  %v543 = vpack.c.b16 %v522, %v521
  %v544 = vpack.c.b16 %v524, %v523
  %v545 = vpack.c.b16 %v526, %v525
  %v546 = vpack.c.b16 %v528, %v527
  %v547 = vpack.c.b16 %v530, %v529
  %v548 = vpack.c.b16 %v532, %v531
  %565 = vmatprep.subr.bf16.mxu0 0
  %566 = vmatpush1.bf16.msra.mxu0 %v540
  %567 = vmatprep.subr.bf16.mxu0 0
  %568 = vmatpush1.bf16.msra.mxu0 %v539
  %569 = vmatprep.subr.bf16.mxu0 0
  %570 = vmatpush1.bf16.msra.mxu0 %v538
  %571 = vmatprep.subr.bf16.mxu0 0
  %572 = vmatpush1.bf16.msra.mxu0 %v537
  %573 = vmatprep.subr.bf16.mxu0 0
  %574 = vmatpush1.bf16.msra.mxu0 %v536
  %575 = vmatprep.subr.bf16.mxu0 0
  %576 = vmatpush1.bf16.msra.mxu0 %v535
  %577 = vmatprep.subr.bf16.mxu0 0
  %578 = vmatpush1.bf16.msra.mxu0 %v534
  %579 = vmatprep.subr.bf16.mxu0 0
  %580 = vmatpush1.bf16.msra.mxu0 %v533
  %581 = vmatprep.subr.bf16.mxu0 0
  %582 = vmatpush2.bf16.msra.mxu0 %v548
  %583 = vmatprep.subr.bf16.mxu0 0
  %584 = vmatpush2.bf16.msra.mxu0 %v547
  %585 = vmatprep.subr.bf16.mxu0 0
  %586 = vmatpush2.bf16.msra.mxu0 %v546
  %587 = vmatprep.subr.bf16.mxu0 0
  %588 = vmatpush2.bf16.msra.mxu0 %v545
  %589 = vmatprep.subr.bf16.mxu0 0
  %590 = vmatpush2.bf16.msra.mxu0 %v544
  %591 = vmatprep.subr.bf16.mxu0 0
  %592 = vmatpush2.bf16.msra.mxu0 %v543
  %593 = vmatprep.subr.bf16.mxu0 0
  %594 = vmatpush2.bf16.msra.mxu0 %v542
  %595 = vmatprep.subr.bf16.mxu0 0
  %596 = vmatpush2.bf16.msra.mxu0 %v541
  %597 = vmatprep.mubr.bf16.mxu0 %v429
  %598 = vmatmul.mubr.bf16.gmra.mxu0 %v428
  %v599 = vpop.f32.mrf.mxu0
  %v600 = vadd.f32 %v467, %v599
  %v601 = vpop.f32.mrf.mxu0
  %v602 = vpop.f32.mrf.mxu0
  %v603 = vadd.f32 %v467, %v602
  %v604 = vpop.f32.mrf.mxu0
  %605 = vdwg.mxu0
  %v606 = vpack.c.bf16 %v603, %v600
  %v608 = vunpack.c.l.b16 %v606
  %v609 = vunpack.c.h.b16 %v606
  %v610 = vpack.c.b16 %v608, %v608
  %v611 = vpack.c.b16 %v609, %v609
  %614 = vst [vmem:[%s5] sm:$0xf] %v610
  %615 = vst [vmem:[%s5 + $0x4] sm:$0xf] %v611
  // Predicated region
  $region22: #{classifier_head.1} parent=0 // pred_check
    _
  $region23: #{classifier_head.1} parent=0 // pred_check_branch
    %617 = sbr.rel (0) target = $region25
  $region24: #{classifier_head.1} parent=0 // pred_region
    _
  $region25: #{classifier_head.1} parent=0 // pred_fallthru
    _
  // Predicated region
  $region26: #{classifier_head.1} parent=0 // pred_check
    _
  $region27: #{classifier_head.1} parent=0 // pred_check_branch
    %619 = sbr.rel (0) target = $region29
  $region28: #{classifier_head.1} parent=0 // pred_region
    _
  $region29: #{classifier_head.1} parent=0 // pred_fallthru
    _

</llo_original>
